<compile_context>
chip_gen: v7x
topology: tpu7x:2x2x1
jax: 0.10.0
libtpu: 0.0.40
codegen_flags: <defaults>
</compile_context>

<pallas_src>
import functools
import math

import jax
import jax.numpy as jnp
from jax.experimental import pallas as pl
from jax.experimental.pallas import tpu as pltpu

DTYPE = jnp.bfloat16   # activation / MXU-operand dtype
LN_EPS = 1e-12
_NEG_INF = -1e30
VMEM_LIMIT = 48 * 1024 * 1024   # > 16/32 MiB default scoped limits, < v7x 64 MiB physical


def _choose_tile(dim, target, align):
    """Largest tile <= target that divides dim and is `align`-aligned (or full dim)."""
    if dim <= target:
        return dim
    t = (target // align) * align
    while t >= align:
        if dim % t == 0:
            return t
        t -= align
    return dim


# ---------------------------------------------------------------------------
# Tiled matmul + bias (+ optional GELU) kernel
# ---------------------------------------------------------------------------
def matmul_bias_kernel(x_ref, w_ref, b_ref, o_ref, acc_ref, *, activation):
    @pl.when(pl.program_id(2) == 0)
    def _():
        acc_ref[...] = jnp.zeros_like(acc_ref)

    acc_ref[...] += jnp.dot(x_ref[...], w_ref[...],
                            preferred_element_type=jnp.float32)

    @pl.when(pl.program_id(2) == pl.num_programs(2) - 1)
    def _():
        acc = acc_ref[...] + b_ref[...].astype(jnp.float32)
        if activation == "gelu":
            acc = jax.nn.gelu(acc, approximate=True)   # matches HF ALBERT gelu_new
        o_ref[...] = acc.astype(o_ref.dtype)


def pallas_matmul_bias(x, w, b, activation=None, out_dtype=None,
                       tm=512, tn=512, tk=512):
    M, K = x.shape
    _, N = w.shape
    out_dtype = out_dtype or x.dtype
    tm = _choose_tile(M, tm, 8)
    tn = _choose_tile(N, tn, 128)
    tk = _choose_tile(K, tk, 128)
    return pl.pallas_call(
        functools.partial(matmul_bias_kernel, activation=activation),
        out_shape=jax.ShapeDtypeStruct((M, N), out_dtype),
        grid_spec=pltpu.PrefetchScalarGridSpec(
            num_scalar_prefetch=0,
            grid=(M // tm, N // tn, K // tk),
            in_specs=[
                pl.BlockSpec((tm, tk), lambda i, j, k: (i, k)),
                pl.BlockSpec((tk, tn), lambda i, j, k: (k, j)),
                pl.BlockSpec((1, tn), lambda i, j, k: (0, j)),
            ],
            out_specs=pl.BlockSpec((tm, tn), lambda i, j, k: (i, j)),
            scratch_shapes=[pltpu.VMEM((tm, tn), jnp.float32)],
        ),
        compiler_params=pltpu.CompilerParams(
            dimension_semantics=("parallel", "parallel", "arbitrary"),
            vmem_limit_bytes=VMEM_LIMIT),
    )(x, w, b.reshape(1, N))


# ---------------------------------------------------------------------------
# Tiled matmul + bias + residual + LayerNorm (fused epilogue, full N per tile)
# ---------------------------------------------------------------------------
def matmul_res_ln_kernel(x_ref, w_ref, b_ref, r_ref, g_ref, be_ref,
                         o_ref, acc_ref, *, eps):
    @pl.when(pl.program_id(1) == 0)
    def _():
        acc_ref[...] = jnp.zeros_like(acc_ref)

    acc_ref[...] += jnp.dot(x_ref[...], w_ref[...],
                            preferred_element_type=jnp.float32)

    @pl.when(pl.program_id(1) == pl.num_programs(1) - 1)
    def _():
        h = (acc_ref[...] + b_ref[...].astype(jnp.float32)
             + r_ref[...].astype(jnp.float32))
        # one-pass variance: E[x^2] - mean^2 (clamped for f32 rounding)
        mean = jnp.mean(h, axis=-1, keepdims=True)
        var = jnp.maximum(jnp.mean(h * h, axis=-1, keepdims=True) - mean * mean, 0.0)
        y = (h - mean) * jax.lax.rsqrt(var + eps)
        y = y * g_ref[...].astype(jnp.float32) + be_ref[...].astype(jnp.float32)
        o_ref[...] = y.astype(o_ref.dtype)


def pallas_matmul_bias_res_ln(x, w, b, residual, gamma, beta, eps=LN_EPS,
                              out_dtype=None, tm=256, tk=512):
    M, K = x.shape
    _, N = w.shape
    out_dtype = out_dtype or x.dtype
    tm = _choose_tile(M, tm, 8)
    tk = _choose_tile(K, tk, 128)
    return pl.pallas_call(
        functools.partial(matmul_res_ln_kernel, eps=eps),
        out_shape=jax.ShapeDtypeStruct((M, N), out_dtype),
        grid_spec=pltpu.PrefetchScalarGridSpec(
            num_scalar_prefetch=0,
            grid=(M // tm, K // tk),
            in_specs=[
                pl.BlockSpec((tm, tk), lambda i, k: (i, k)),
                pl.BlockSpec((tk, N), lambda i, k: (k, 0)),
                pl.BlockSpec((1, N), lambda i, k: (0, 0)),
                pl.BlockSpec((tm, N), lambda i, k: (i, 0)),
                pl.BlockSpec((1, N), lambda i, k: (0, 0)),
                pl.BlockSpec((1, N), lambda i, k: (0, 0)),
            ],
            out_specs=pl.BlockSpec((tm, N), lambda i, k: (i, 0)),
            scratch_shapes=[pltpu.VMEM((tm, N), jnp.float32)],
        ),
        compiler_params=pltpu.CompilerParams(
            dimension_semantics=("parallel", "arbitrary"),
            vmem_limit_bytes=VMEM_LIMIT),
    )(x, w, b.reshape(1, N), residual, gamma.reshape(1, N), beta.reshape(1, N))


# ---------------------------------------------------------------------------
# Fused (x + add) -> LayerNorm kernel (embedding: word + pos + type, then LN)
# ---------------------------------------------------------------------------
def add_ln_kernel(x_ref, a_ref, g_ref, b_ref, o_ref, *, eps):
    x = x_ref[...].astype(jnp.float32) + a_ref[...].astype(jnp.float32)
    mean = jnp.mean(x, axis=-1, keepdims=True)
    var = jnp.maximum(jnp.mean(x * x, axis=-1, keepdims=True) - mean * mean, 0.0)
    y = (x - mean) * jax.lax.rsqrt(var + eps)
    y = y * g_ref[...].astype(jnp.float32) + b_ref[...].astype(jnp.float32)
    o_ref[...] = y.astype(o_ref.dtype)


def pallas_add_layernorm(x, add, gamma, beta, eps=LN_EPS, out_dtype=None):
    B, S, E = x.shape
    out_dtype = out_dtype or x.dtype
    ts = _choose_tile(S, 1024, 8)
    return pl.pallas_call(
        functools.partial(add_ln_kernel, eps=eps),
        out_shape=jax.ShapeDtypeStruct((B, S, E), out_dtype),
        grid=(B, S // ts),
        in_specs=[
            pl.BlockSpec((1, ts, E), lambda b, s: (b, s, 0)),
            pl.BlockSpec((ts, E), lambda b, s: (s, 0)),
            pl.BlockSpec((1, E), lambda b, s: (0, 0)),
            pl.BlockSpec((1, E), lambda b, s: (0, 0)),
        ],
        out_specs=pl.BlockSpec((1, ts, E), lambda b, s: (b, s, 0)),
        compiler_params=pltpu.CompilerParams(
            dimension_semantics=("parallel", "parallel"),
            vmem_limit_bytes=VMEM_LIMIT),
    )(x, add, gamma.reshape(1, E), beta.reshape(1, E))


# ---------------------------------------------------------------------------
# Flash-style attention reading head groups directly from the fused QKV output
# ---------------------------------------------------------------------------
def _head_group_size(H, hd):
    """Smallest heads-per-group so the group's lane width is a multiple of 128 dividing H."""
    nh = H // hd
    for g in range(1, nh + 1):
        ghd = g * hd
        if ghd % 128 == 0 and H % ghd == 0:
            return g
    return None


def flash_attn_kernel(q_ref, k_ref, v_ref, o_ref, m_ref, l_ref, acc_ref, *, G, hd):
    ki = pl.program_id(3)

    @pl.when(ki == 0)
    def _():
        m_ref[...] = jnp.full(m_ref.shape, _NEG_INF, jnp.float32)
        l_ref[...] = jnp.zeros_like(l_ref)
        acc_ref[...] = jnp.zeros_like(acc_ref)

    is_last = ki == pl.num_programs(3) - 1

    # NOTE: 1/sqrt(hd) is already folded into the Q projection weights.
    # TODO(synk): attention_mask is not applied (mask=None path only).
    for h in range(G):                                        # static unroll over heads
        qh = q_ref[0, :, h * hd:(h + 1) * hd]                 # (tq,  hd) bf16
        kh = k_ref[0, :, h * hd:(h + 1) * hd]                 # (tkv, hd) bf16
        vh = v_ref[0, :, h * hd:(h + 1) * hd]                 # (tkv, hd) bf16
        # scores (tq, tkv): contract hd without an explicit k transpose.
        s = jax.lax.dot_general(qh, kh,
                                dimension_numbers=(((1,), (1,)), ((), ())),
                                preferred_element_type=jnp.float32)
        m_prev = m_ref[h]                                     # (tq, 1)
        m_new = jnp.maximum(m_prev, jnp.max(s, axis=-1, keepdims=True))
        alpha = jnp.exp(m_prev - m_new)
        p = jnp.exp(s - m_new)
        l_ref[h] = alpha * l_ref[h] + jnp.sum(p, axis=-1, keepdims=True)
        acc_ref[h] = alpha * acc_ref[h] + jnp.dot(
            p.astype(vh.dtype), vh, preferred_element_type=jnp.float32)
        m_ref[h] = m_new

        @pl.when(is_last)
        def _store(h=h):
            inv_l = pl.reciprocal(l_ref[h], approx=True)
            o_ref[0, :, h * hd:(h + 1) * hd] = (acc_ref[h] * inv_l).astype(o_ref.dtype)


def pallas_attention_from_qkv(qkv, B, S, num_heads, tq=256, tkv=512):
    """qkv: [B*S, 3H] fused Q/K/V projection output. Returns context [B, S, H]."""
    H = qkv.shape[-1] // 3
    hd = H // num_heads
    qkv3 = qkv.reshape(B, S, 3 * H)                           # free reshape

    g = _head_group_size(H, hd)
    if g is not None:
        # Fast path: read 128-lane head-group slices straight from qkv (no XLA slices).
        ghd = g * hd
        n_hg = H // ghd
        q_in = k_in = v_in = qkv3
        q_off, k_off, v_off = 0, n_hg, 2 * n_hg
    else:
        # TODO(synk): no 128-lane-aligned head grouping exists for this (H, hd);
        # fall back to XLA slices with all heads in one lane group.
        g, ghd, n_hg = num_heads, H, 1
        q_in = qkv3[:, :, :H]
        k_in = qkv3[:, :, H:2 * H]
        v_in = qkv3[:, :, 2 * H:]
        q_off = k_off = v_off = 0

    tq = _choose_tile(S, tq, 8)
    tkv = _choose_tile(S, tkv, 8)

    return pl.pallas_call(
        functools.partial(flash_attn_kernel, G=g, hd=hd),
        out_shape=jax.ShapeDtypeStruct((B, S, H), qkv.dtype),
        grid=(B, n_hg, S // tq, S // tkv),
        in_specs=[
            pl.BlockSpec((1, tq, ghd), lambda b, hg, qi, ki, o=q_off: (b, qi, o + hg)),
            pl.BlockSpec((1, tkv, ghd), lambda b, hg, qi, ki, o=k_off: (b, ki, o + hg)),
            pl.BlockSpec((1, tkv, ghd), lambda b, hg, qi, ki, o=v_off: (b, ki, o + hg)),
        ],
        out_specs=pl.BlockSpec((1, tq, ghd), lambda b, hg, qi, ki: (b, qi, hg)),
        scratch_shapes=[
            pltpu.VMEM((g, tq, 1), jnp.float32),    # running max
            pltpu.VMEM((g, tq, 1), jnp.float32),    # running denom
            pltpu.VMEM((g, tq, hd), jnp.float32),   # output accumulator
        ],
        compiler_params=pltpu.CompilerParams(
            dimension_semantics=("parallel", "parallel", "parallel", "arbitrary"),
            vmem_limit_bytes=VMEM_LIMIT),
    )(q_in, k_in, v_in)


# ---------------------------------------------------------------------------
# Embedding.get_embeddings(): concat last-4 hidden states + mean of h[-2] over S
# ---------------------------------------------------------------------------
def embed_out_kernel(h1_ref, h2_ref, h3_ref, h4_ref, sent_ref, tok_ref, *, inv_seq, H):
    # h1..h4 = hidden_states[-1], [-2], [-3], [-4]; lane-dense H-wide stores into (1,ts,4H).
    tok_ref[:, :, 0 * H:1 * H] = h1_ref[...].astype(tok_ref.dtype)
    tok_ref[:, :, 1 * H:2 * H] = h2_ref[...].astype(tok_ref.dtype)
    tok_ref[:, :, 2 * H:3 * H] = h3_ref[...].astype(tok_ref.dtype)
    tok_ref[:, :, 3 * H:4 * H] = h4_ref[...].astype(tok_ref.dtype)

    @pl.when(pl.program_id(1) == 0)
    def _():
        sent_ref[...] = jnp.zeros_like(sent_ref)

    sent_ref[...] += jnp.sum(h2_ref[...].astype(jnp.float32),
                             axis=1, keepdims=True) * inv_seq


def pallas_get_embeddings(hidden_states):
    h1, h2, h3, h4 = (hidden_states[-1], hidden_states[-2],
                      hidden_states[-3], hidden_states[-4])
    B, S, H = h1.shape
    ts = _choose_tile(S, 256, 8)
    sent, tok = pl.pallas_call(
        functools.partial(embed_out_kernel, inv_seq=1.0 / S, H=H),
        out_shape=(
            jax.ShapeDtypeStruct((B, 1, H), jnp.float32),
            jax.ShapeDtypeStruct((B, S, 4 * H), jnp.float32),
        ),
        grid=(B, S // ts),
        in_specs=[pl.BlockSpec((1, ts, H), lambda b, s: (b, s, 0))] * 4,
        out_specs=(
            pl.BlockSpec((1, 1, H), lambda b, s: (b, 0, 0)),
            pl.BlockSpec((1, ts, 4 * H), lambda b, s: (b, s, 0)),
        ),
        compiler_params=pltpu.CompilerParams(
            dimension_semantics=("parallel", "arbitrary"),
            vmem_limit_bytes=VMEM_LIMIT),
    )(h1, h2, h3, h4)
    return sent.reshape(B, H), tok


# ---------------------------------------------------------------------------
# ALBERT backbone built from the kernels above
# ---------------------------------------------------------------------------
def init_params(key, cfg):
    V = cfg["vocab_size"]
    E = cfg["embedding_size"]
    H = cfg["hidden_size"]
    I = cfg["intermediate_size"]
    P = cfg["max_position_embeddings"]
    ks = jax.random.split(key, 10)

    def n(k, shape, dtype=DTYPE):
        return (0.02 * jax.random.normal(k, shape, jnp.float32)).astype(dtype)

    return dict(
        # Embedding tables stored in bf16 so the gathered [B,S,E] intermediate is bf16.
        word_emb=n(ks[0], (V, E)),
        pos_emb=n(ks[1], (P, E)),
        type_emb=n(ks[2], (2, E)),
        emb_ln_g=jnp.ones((E,), jnp.float32), emb_ln_b=jnp.zeros((E,), jnp.float32),
        emb_proj_w=n(ks[3], (E, H)), emb_proj_b=jnp.zeros((H,), jnp.float32),
        # ALBERT shares one layer's parameters across all layers.
        q_w=n(ks[4], (H, H)), q_b=jnp.zeros((H,), jnp.float32),
        k_w=n(ks[5], (H, H)), k_b=jnp.zeros((H,), jnp.float32),
        v_w=n(ks[6], (H, H)), v_b=jnp.zeros((H,), jnp.float32),
        ao_w=n(ks[7], (H, H)), ao_b=jnp.zeros((H,), jnp.float32),
        attn_ln_g=jnp.ones((H,), jnp.float32), attn_ln_b=jnp.zeros((H,), jnp.float32),
        ffn_w=n(ks[8], (H, I)), ffn_b=jnp.zeros((I,), jnp.float32),
        ffn_out_w=n(ks[9], (I, H)), ffn_out_b=jnp.zeros((H,), jnp.float32),
        ffn_ln_g=jnp.ones((H,), jnp.float32), ffn_ln_b=jnp.zeros((H,), jnp.float32),
    )


def albert_hidden_states(params, input_ids, cfg):
    B, S = input_ids.shape
    E = cfg["embedding_size"]
    H = cfg["hidden_size"]
    nh = cfg["num_heads"]
    hd = H // nh

    # Embedding lookup as a bf16 gather (no f32 [B,S,E] HBM round trip).
    # TODO(synk): token-type ids are hard-coded to 0 and positions to 0..S-1.
    word = jnp.take(params["word_emb"], input_ids, axis=0)               # [B, S, E] bf16
    pos_type = params["pos_emb"][:S] + params["type_emb"][0][None]       # [S, E]    bf16
    emb = pallas_add_layernorm(word, pos_type, params["emb_ln_g"],
                               params["emb_ln_b"], out_dtype=DTYPE)      # [B, S, E] bf16

    # embedding_hidden_mapping_in: E -> H (hidden_states[0] in HF ALBERT).
    h = pallas_matmul_bias(emb.reshape(B * S, E),
                           params["emb_proj_w"], params["emb_proj_b"])
    hidden_states = [h.reshape(B, S, H)]

    # Fused Q/K/V projection (shared across layers); fold the 1/sqrt(hd) attention
    # scale into the Q weights/bias once so the attention kernel never rescales q.
    q_scale = 1.0 / math.sqrt(hd)
    qkv_w = jnp.concatenate([params["q_w"] * q_scale, params["k_w"], params["v_w"]], axis=1)
    qkv_b = jnp.concatenate([params["q_b"] * q_scale, params["k_b"], params["v_b"]], axis=0)

    # TODO(synk): exploit ALBERT weight sharing by keeping the shared layer weights
    # resident in VMEM across the layer loop (persistent kernel) instead of re-streaming
    # them from HBM every layer.
    for _ in range(cfg["num_layers"]):
        h2d = hidden_states[-1].reshape(B * S, H)
        qkv = pallas_matmul_bias(h2d, qkv_w, qkv_b)                      # [B*S, 3H]
        ctx = pallas_attention_from_qkv(qkv, B, S, nh).reshape(B * S, H)
        # attention output projection + bias + residual + LayerNorm (fused)
        attn = pallas_matmul_bias_res_ln(ctx, params["ao_w"], params["ao_b"], h2d,
                                         params["attn_ln_g"], params["attn_ln_b"])
        ffn = pallas_matmul_bias(attn, params["ffn_w"], params["ffn_b"],
                                 activation="gelu")
        # FFN output projection + bias + residual + LayerNorm (fused)
        out = pallas_matmul_bias_res_ln(ffn, params["ffn_out_w"], params["ffn_out_b"],
                                        attn, params["ffn_ln_g"], params["ffn_ln_b"])
        hidden_states.append(out.reshape(B, S, H))
    return hidden_states


def albert_embedding_forward(params, input_ids, cfg, mask=None,
                             output_token_embeddings=True):
    """AlbertEmbedding.forward: returns (sentence_vector, token_vectors)."""
    # TODO(synk): attention_mask is not applied (mask=None path only, as in the example).
    hidden_states = albert_hidden_states(params, input_ids, cfg)
    sentence_vector, token_vectors = pallas_get_embeddings(hidden_states)
    if not output_token_embeddings:
        token_vectors = None
    return (sentence_vector, token_vectors)


if __name__ == "__main__":
    cfg = dict(
        vocab_size=64,
        embedding_size=64,
        hidden_size=128,         # 2 heads x head_dim 64 -> one 128-lane head group
        intermediate_size=256,
        num_heads=2,
        num_layers=4,
        max_position_embeddings=16,
    )
    key = jax.random.PRNGKey(0)
    pkey, dkey = jax.random.split(key)
    params = init_params(pkey, cfg)
    input_ids = jax.random.randint(dkey, (2, 8), 0, cfg["vocab_size"])

    sent, tok = albert_embedding_forward(params, input_ids, cfg)
    (sent, tok) = jax.block_until_ready((sent, tok))

    assert sent.shape == (2, cfg["hidden_size"])                 # [B, H]
    assert tok.shape == (2, 8, 4 * cfg["hidden_size"])           # [B, S, 4H]
    assert sent.dtype == jnp.float32 and tok.dtype == jnp.float32
    assert bool(jnp.all(jnp.isfinite(sent))) and bool(jnp.all(jnp.isfinite(tok)))
    print("KERNEL_OK")
</pallas_src>

<mosaic_0001>
module attributes {stable_mosaic.version = 11 : i64} {
  func.func @add_ln_kernel(%arg0: i32, %arg1: i32, %arg2: memref<1x8x64xbf16, #tpu.memory_space<vmem>>, %arg3: memref<8x64xbf16, #tpu.memory_space<vmem>>, %arg4: memref<1x64xf32, #tpu.memory_space<vmem>>, %arg5: memref<1x64xf32, #tpu.memory_space<vmem>>, %arg6: memref<1x8x64xbf16, #tpu.memory_space<vmem>>) attributes {dimension_semantics = [#tpu.dimension_semantics<parallel>, #tpu.dimension_semantics<parallel>], iteration_bounds = array<i64: 2, 1>, scalar_prefetch = 0 : i64, scratch_operands = 0 : i64, tpu.core_type = #tpu.core_type<tc>, window_params = [{transform_indices = @transform_0, window_bounds = array<i64: 1, 8, 64>}, {transform_indices = @transform_1, window_bounds = array<i64: 8, 64>}, {pipeline_mode = #tpu.pipeline_mode<synchronous>, transform_indices = @transform_2, window_bounds = array<i64: 1, 64>}, {pipeline_mode = #tpu.pipeline_mode<synchronous>, transform_indices = @transform_3, window_bounds = array<i64: 1, 64>}, {transform_indices = @transform_4, window_bounds = array<i64: 1, 8, 64>}]} {
    %c0 = arith.constant 0 : index
    %c0_0 = arith.constant 0 : index
    %c0_1 = arith.constant 0 : index
    %0 = vector.load %arg2[%c0, %c0_0, %c0_1] : memref<1x8x64xbf16, #tpu.memory_space<vmem>>, vector<1x8x64xbf16>
    %1 = arith.extf %0 : vector<1x8x64xbf16> to vector<1x8x64xf32>
    %c0_2 = arith.constant 0 : index
    %c0_3 = arith.constant 0 : index
    %2 = vector.load %arg3[%c0_2, %c0_3] : memref<8x64xbf16, #tpu.memory_space<vmem>>, vector<8x64xbf16>
    %3 = arith.extf %2 : vector<8x64xbf16> to vector<8x64xf32>
    %4 = vector.shape_cast %3 : vector<8x64xf32> to vector<1x8x64xf32>
    %5 = arith.addf %1, %4 : vector<1x8x64xf32>
    %cst = arith.constant dense<0.000000e+00> : vector<1x8xf32>
    %6 = vector.multi_reduction <add>, %5, %cst [2] : vector<1x8x64xf32> to vector<1x8xf32>
    %7 = vector.shape_cast %6 : vector<1x8xf32> to vector<1x8x1xf32>
    %cst_4 = arith.constant 6.400000e+01 : f32
    %8 = vector.broadcast %cst_4 : f32 to vector<1x8x1xf32>
    %9 = arith.divf %7, %8 : vector<1x8x1xf32>
    %10 = arith.mulf %5, %5 : vector<1x8x64xf32>
    %cst_5 = arith.constant dense<0.000000e+00> : vector<1x8xf32>
    %11 = vector.multi_reduction <add>, %10, %cst_5 [2] : vector<1x8x64xf32> to vector<1x8xf32>
    %12 = vector.shape_cast %11 : vector<1x8xf32> to vector<1x8x1xf32>
    %cst_6 = arith.constant 6.400000e+01 : f32
    %13 = vector.broadcast %cst_6 : f32 to vector<1x8x1xf32>
    %14 = arith.divf %12, %13 : vector<1x8x1xf32>
    %15 = arith.mulf %9, %9 : vector<1x8x1xf32>
    %16 = arith.subf %14, %15 : vector<1x8x1xf32>
    %cst_7 = arith.constant 0.000000e+00 : f32
    %17 = vector.broadcast %cst_7 : f32 to vector<1x8x1xf32>
    %18 = arith.maximumf %16, %17 : vector<1x8x1xf32>
    %19 = vector.broadcast %9 : vector<1x8x1xf32> to vector<1x8x64xf32>
    %20 = arith.subf %5, %19 : vector<1x8x64xf32>
    %cst_8 = arith.constant 9.99999996E-13 : f32
    %21 = vector.broadcast %cst_8 : f32 to vector<1x8x1xf32>
    %22 = arith.addf %18, %21 : vector<1x8x1xf32>
    %23 = math.rsqrt %22 : vector<1x8x1xf32>
    %24 = vector.broadcast %23 : vector<1x8x1xf32> to vector<1x8x64xf32>
    %25 = arith.mulf %20, %24 : vector<1x8x64xf32>
    %c0_9 = arith.constant 0 : index
    %c0_10 = arith.constant 0 : index
    %26 = vector.load %arg4[%c0_9, %c0_10] : memref<1x64xf32, #tpu.memory_space<vmem>>, vector<1x64xf32>
    %27 = vector.shape_cast %26 : vector<1x64xf32> to vector<1x1x64xf32>
    %28 = vector.broadcast %27 : vector<1x1x64xf32> to vector<1x8x64xf32>
    %29 = arith.mulf %25, %28 : vector<1x8x64xf32>
    %c0_11 = arith.constant 0 : index
    %c0_12 = arith.constant 0 : index
    %30 = vector.load %arg5[%c0_11, %c0_12] : memref<1x64xf32, #tpu.memory_space<vmem>>, vector<1x64xf32>
    %31 = vector.shape_cast %30 : vector<1x64xf32> to vector<1x1x64xf32>
    %32 = vector.broadcast %31 : vector<1x1x64xf32> to vector<1x8x64xf32>
    %33 = arith.addf %29, %32 : vector<1x8x64xf32>
    %34 = arith.truncf %33 : vector<1x8x64xf32> to vector<1x8x64xbf16>
    %c0_13 = arith.constant 0 : index
    %c0_14 = arith.constant 0 : index
    %c0_15 = arith.constant 0 : index
    %35 = vector.load %arg6[%c0_13, %c0_14, %c0_15] : memref<1x8x64xbf16, #tpu.memory_space<vmem>>, vector<1x8x64xbf16>
    tpu.vector_store %arg6[%c0_13, %c0_14, %c0_15], %34 {strides = array<i32>} : memref<1x8x64xbf16, #tpu.memory_space<vmem>>, vector<1x8x64xbf16>,
    return
  }
  func.func @transform_0(%arg0: i32, %arg1: i32) -> (i32, i32, i32) {
    %c0_i32 = arith.constant 0 : i32
    %c0_i32_0 = arith.constant 0 : i32
    return %arg0, %arg1, %c0_i32 : i32, i32, i32
  }
  func.func @transform_1(%arg0: i32, %arg1: i32) -> (i32, i32) {
    %c0_i32 = arith.constant 0 : i32
    %c0_i32_0 = arith.constant 0 : i32
    return %arg1, %c0_i32 : i32, i32
  }
  func.func @transform_2(%arg0: i32, %arg1: i32) -> (i32, i32) {
    %c0_i32 = arith.constant 0 : i32
    %c0_i32_0 = arith.constant 0 : i32
    %c0_i32_1 = arith.constant 0 : i32
    return %c0_i32, %c0_i32_0 : i32, i32
  }
  func.func @transform_3(%arg0: i32, %arg1: i32) -> (i32, i32) {
    %c0_i32 = arith.constant 0 : i32
    %c0_i32_0 = arith.constant 0 : i32
    %c0_i32_1 = arith.constant 0 : i32
    return %c0_i32, %c0_i32_0 : i32, i32
  }
  func.func @transform_4(%arg0: i32, %arg1: i32) -> (i32, i32, i32) {
    %c0_i32 = arith.constant 0 : i32
    %c0_i32_0 = arith.constant 0 : i32
    return %arg0, %arg1, %c0_i32 : i32, i32, i32
  }
}

</mosaic_0001>

<llo_original>
// kernel: tpu_custom_call.1
$region0: #{tpu_custom_call.1}
  #allocation0 [shape = 'u32[]', space=smem, size = 0x4, offset = 0x4, fixed_abs, tag = 'smem constant byte address 0x4 - core index']
  #allocation1 [shape = 'u32[144,128]{1,0:T(1,128)}', space=vmem, size = 0x12000, scoped, tag = 'internal scratch']
  %s0 = inlined_call_operand.hbm [shape: bf16[2,8,64], index: 0, kind: input, shape index: {}]
  %s1 = inlined_call_operand.hbm [shape: bf16[8,64], index: 1, kind: input, shape index: {}]
  %s2 = inlined_call_operand.vmem [shape: f32[1,64], index: 2, kind: input, shape index: {}]
  %s3 = inlined_call_operand.vmem [shape: f32[1,64], index: 3, kind: input, shape index: {}]
  %s4 = inlined_call_operand.hbm [shape: bf16[2,8,64], index: 4, kind: output, shape index: {}]
  %s5 = sld [smem:[#allocation0]]
  $region57: #{tpu_custom_call.1} parent=0
    _
  %s7 = ssub.s32 1, %s5
  %s8 = scalar_select 0, %s7, %s5
  $region1: #{tpu_custom_call.1} parent=0
    #allocation2 [shape = 'u8[4096]{0}', space=vmem, size = 0x1000, scoped, tag = 'input window, operand 0']
    #allocation3 [shape = 's32[2]{0}', space=sflag, size = 0x8, scoped, tag = 'scoped memory for tpu_custom_call.1']
    #allocation4 [shape = 's32[2]{0}', space=sflag, size = 0x8, scoped, tag = 'scoped memory for tpu_custom_call.1']
    #allocation5 [shape = 'u8[2048]{0}', space=vmem, size = 0x800, scoped, tag = 'input window, operand 1, single buffered']
    #allocation6 [shape = 's32[1]{0}', space=sflag, size = 0x4, scoped, tag = 'scoped memory for tpu_custom_call.1']
    #allocation7 [shape = 'u8[4096]{0}', space=vmem, size = 0x1000, scoped, tag = 'output window, operand 0']
    %9 = vsyncpa [#allocation3], 0
    %s10 = scalar_lea.sflag [#allocation3], 1
    %11 = vsyncpa %s10, 0
    %12 = vsyncpa [#allocation6], 0
    %13 = vsyncpa [#allocation4], 0
    %s14 = scalar_lea.sflag [#allocation4], 1
    %15 = vsyncpa %s14, 0
    loop: start=0, step=1, limit=4
    $region2: #{tpu_custom_call.1} parent=1 // loop_pre_header
      _
    $region3: #{tpu_custom_call.1} parent=1 // loop_header
      %s17 = sphi 0, %s21
      %p18 = scmp.ge.s32.totalorder %s17, 4
      %s24 = sphi 0, %s36
      %s25 = sphi 0, %s32
      %s26 = sphi 0, %s24
      %s27 = sphi 0, %s25
      %s28 = sphi 0, %s26
      %s29 = sphi 0, %s27
      %s41 = sphi 0, %s43
      %s44 = sphi 0, %s41
      %s45 = sphi 0, %s44
      %s61 = sphi 0, %s45
      %s67 = sphi 0, %s69
      %s70 = sphi 0, %s67
      %s71 = sphi 0, %s70
      %s87 = sphi 0, %s71
      %s91 = sphi 0, %s91
      %s93 = sphi 0, %s91
      %s94 = sphi 0, %s93
      %s108 = sphi 0, %s94
      %s112 = sphi 0, %s112
      %s114 = sphi 0, %s112
      %s115 = sphi 0, %s114
      %s129 = sphi 0, %s115
      %s137 = sphi 0, %s139
      %s140 = sphi 0, %s137
      %s141 = sphi 0, %s140
      %s157 = sphi 0, %s141
    $region4: #{tpu_custom_call.1} parent=1 // loop_header_branch
      %20 = sbr.rel (%p18) target = $region8
    $region5: #{tpu_custom_call.1} parent=1 // loop_body
      %s22 = ssub.s32 %s17, 1
      %s23 = ssub.s32 %s17, 2
      %s30 = sadd.s32 1, %s25
      %p31 = scmp.ge.s32.totalorder %s30, 1
      %s32 = scalar_select %p31, 0, %s30
      %s33 = sadd.s32 1, %s24
      %s34 = scalar_select %p31, %s33, %s24
      %p35 = scmp.ge.s32.totalorder %s34, 2
      %s36 = scalar_select %p35, 0, %s34
      %s37 = ssub.s32 %s24, %s36
      %s38 = ssub.s32 %s25, %s32
      %s39 = sor.u32 %s37, %s38
      %p40 = scmp.eq.s32.totalorder %s39, 0
      %s42 = sadd.s32 %s41, 1
      %s43 = scalar_select %p40, %s41, %s42
      %p46 = pneg %p40
      %p47 = scmp.eq.s32.totalorder %s17, 1
      %p48 = por %p46, %p47
      %p49 = scmp.ne.s32.totalorder %s41, %s44
      %p50 = scmp.eq.s32.totalorder %s17, 0
      %p51 = por %p49, %p50
      %p52 = scmp.ne.s32.totalorder %s41, %s44
      %p53 = scmp.eq.s32.totalorder %s22, 1
      %p54 = por %p52, %p53
      %p55 = scmp.ne.s32.totalorder %s44, %s45
      %p56 = scmp.eq.s32.totalorder %s22, 0
      %p57 = por %p55, %p56
      %p58 = scmp.ne.s32.totalorder %s44, %s45
      %p59 = scmp.eq.s32.totalorder %s23, 1
      %p60 = por %p58, %p59
      %p62 = scmp.ne.s32.totalorder %s45, %s61
      %p63 = scmp.eq.s32.totalorder %s23, 0
      %p64 = por %p62, %p63
      %s65 = ssub.s32 %s25, %s32
      %p66 = scmp.eq.s32.totalorder %s65, 0
      %s68 = sadd.s32 %s67, 1
      %s69 = scalar_select %p66, %s67, %s68
      %p72 = pneg %p66
      %p73 = scmp.eq.s32.totalorder %s17, 1
      %p74 = por %p72, %p73
      %p75 = scmp.ne.s32.totalorder %s67, %s70
      %p76 = scmp.eq.s32.totalorder %s17, 0
      %p77 = por %p75, %p76
      %p78 = scmp.ne.s32.totalorder %s67, %s70
      %p79 = scmp.eq.s32.totalorder %s22, 1
      %p80 = por %p78, %p79
      %p81 = scmp.ne.s32.totalorder %s70, %s71
      %p82 = scmp.eq.s32.totalorder %s22, 0
      %p83 = por %p81, %p82
      %p84 = scmp.ne.s32.totalorder %s70, %s71
      %p85 = scmp.eq.s32.totalorder %s23, 1
      %p86 = por %p84, %p85
      %p88 = scmp.ne.s32.totalorder %s71, %s87
      %p89 = scmp.eq.s32.totalorder %s23, 0
      %p90 = por %p88, %p89
      %s92 = sadd.s32 %s91, 1
      %p95 = scmp.eq.s32.totalorder %s17, 1
      %p96 = scmp.ne.s32.totalorder %s91, %s93
      %p97 = scmp.eq.s32.totalorder %s17, 0
      %p98 = por %p96, %p97
      %p99 = scmp.ne.s32.totalorder %s91, %s93
      %p100 = scmp.eq.s32.totalorder %s22, 1
      %p101 = por %p99, %p100
      %p102 = scmp.ne.s32.totalorder %s93, %s94
      %p103 = scmp.eq.s32.totalorder %s22, 0
      %p104 = por %p102, %p103
      %p105 = scmp.ne.s32.totalorder %s93, %s94
      %p106 = scmp.eq.s32.totalorder %s23, 1
      %p107 = por %p105, %p106
      %p109 = scmp.ne.s32.totalorder %s94, %s108
      %p110 = scmp.eq.s32.totalorder %s23, 0
      %p111 = por %p109, %p110
      %s113 = sadd.s32 %s112, 1
      %p116 = scmp.eq.s32.totalorder %s17, 1
      %p117 = scmp.ne.s32.totalorder %s112, %s114
      %p118 = scmp.eq.s32.totalorder %s17, 0
      %p119 = por %p117, %p118
      %p120 = scmp.ne.s32.totalorder %s112, %s114
      %p121 = scmp.eq.s32.totalorder %s22, 1
      %p122 = por %p120, %p121
      %p123 = scmp.ne.s32.totalorder %s114, %s115
      %p124 = scmp.eq.s32.totalorder %s22, 0
      %p125 = por %p123, %p124
      %p126 = scmp.ne.s32.totalorder %s114, %s115
      %p127 = scmp.eq.s32.totalorder %s23, 1
      %p128 = por %p126, %p127
      %p130 = scmp.ne.s32.totalorder %s115, %s129
      %p131 = scmp.eq.s32.totalorder %s23, 0
      %p132 = por %p130, %p131
      %s133 = ssub.s32 %s24, %s36
      %s134 = ssub.s32 %s25, %s32
      %s135 = sor.u32 %s133, %s134
      %p136 = scmp.eq.s32.totalorder %s135, 0
      %s138 = sadd.s32 %s137, 1
      %s139 = scalar_select %p136, %s137, %s138
      %p142 = pneg %p136
      %p143 = scmp.eq.s32.totalorder %s17, 1
      %p144 = por %p142, %p143
      %p145 = scmp.ne.s32.totalorder %s137, %s140
      %p146 = scmp.eq.s32.totalorder %s17, 0
      %p147 = por %p145, %p146
      %p148 = scmp.ne.s32.totalorder %s137, %s140
      %p149 = scmp.eq.s32.totalorder %s22, 1
      %p150 = por %p148, %p149
      %p151 = scmp.ne.s32.totalorder %s140, %s141
      %p152 = scmp.eq.s32.totalorder %s22, 0
      %p153 = por %p151, %p152
      %p154 = scmp.ne.s32.totalorder %s140, %s141
      %p155 = scmp.eq.s32.totalorder %s23, 1
      %p156 = por %p154, %p155
      %p158 = scmp.ne.s32.totalorder %s141, %s157
      %p159 = scmp.eq.s32.totalorder %s23, 0
      %p160 = por %p158, %p159
      %p161 = scmp.le.s32.totalorder 1, %s17
      %p162 = scmp.lt.s32.totalorder %s17, 3
      %p163 = pnand %p161, %p162
      %p164 = pneg %p163
      // Predicated region
      $region9: #{tpu_custom_call.1} parent=5 // pred_check
        _
      $region10: #{tpu_custom_call.1} parent=5 // pred_check_branch
        %166 = sbr.rel (%p163) target = $region12
      $region11: #{tpu_custom_call.1} parent=5 // pred_region
        %s167 = ssub.s32 %s17, 1
        // Predicated region
        $region13: #{tpu_custom_call.1} parent=11 // pred_check
          %p168 = pneg %p83
        $region14: #{tpu_custom_call.1} parent=11 // pred_check_branch
          %170 = sbr.rel (%p168) target = $region16
        $region15: #{tpu_custom_call.1} parent=11 // pred_region
          %s172 = ssub.s32 64, 64
          %173 = vsyncadd [#allocation6], %s172
          %s174 = smul.addr %s27, 64
          %s175 = scalar_lea.hbm %s1, %s174
          %s177 = sshll.u32 [#allocation5], 4
          %s178 = int_to_ptr.vmem [resolvable:$true] %s177
          %180 = dma.hbm_to_vmem [thread:$0]  %s175, 64, %s178, [#allocation6]
        $region16: #{tpu_custom_call.1} parent=11 // pred_fallthru
          _
        // Predicated region
        $region17: #{tpu_custom_call.1} parent=11 // pred_check
          %p181 = pneg %p104
        $region18: #{tpu_custom_call.1} parent=11 // pred_check_branch
          %183 = sbr.rel (%p181) target = $region20
        $region19: #{tpu_custom_call.1} parent=11 // pred_region
          _
        $region20: #{tpu_custom_call.1} parent=11 // pred_fallthru
          _
        // Predicated region
        $region21: #{tpu_custom_call.1} parent=11 // pred_check
          %p184 = pneg %p125
        $region22: #{tpu_custom_call.1} parent=11 // pred_check_branch
          %186 = sbr.rel (%p184) target = $region24
        $region23: #{tpu_custom_call.1} parent=11 // pred_region
          _
        $region24: #{tpu_custom_call.1} parent=11 // pred_fallthru
          _
      $region12: #{tpu_custom_call.1} parent=5 // pred_fallthru
        _
      %p187 = scmp.lt.s32.totalorder %s17, 2
      // Predicated region
      $region25: #{tpu_custom_call.1} parent=5 // pred_check
        %p188 = pneg %p187
      $region26: #{tpu_custom_call.1} parent=5 // pred_check_branch
        %190 = sbr.rel (%p188) target = $region28
      $region27: #{tpu_custom_call.1} parent=5 // pred_region
        // Predicated region
        $region29: #{tpu_custom_call.1} parent=27 // pred_check
          %p191 = pneg %p51
        $region30: #{tpu_custom_call.1} parent=27 // pred_check_branch
          %193 = sbr.rel (%p191) target = $region32
        $region31: #{tpu_custom_call.1} parent=27 // pred_region
          %s194 = sand.u32 %s41, 1
          %s195 = scalar_lea.sflag [#allocation3], %s194
          %s196 = sand.u32 %s41, 1
          %s197 = smul.addr %s196, 4
          %s198 = scalar_lea.vmem [#allocation2], %s197
          %s200 = ssub.s32 64, 64
          %201 = vsyncadd %s195, %s200
          %s202 = sadd.s32 %s25, %s24
          %s203 = smul.addr %s202, 64
          %s204 = scalar_lea.hbm %s0, %s203
          %s206 = sshll.u32 %s198, 4
          %s207 = int_to_ptr.vmem [resolvable:$true] %s206
          %209 = dma.hbm_to_vmem [thread:$0]  %s204, 64, %s207, %s195
        $region32: #{tpu_custom_call.1} parent=27 // pred_fallthru
          _
      $region28: #{tpu_custom_call.1} parent=5 // pred_fallthru
        _
      %p210 = scmp.le.s32.totalorder 1, %s17
      %p211 = scmp.lt.s32.totalorder %s17, 3
      %p212 = pnand %p210, %p211
      %p213 = pneg %p212
      // Predicated region
      $region33: #{tpu_custom_call.1} parent=5 // pred_check
        _
      $region34: #{tpu_custom_call.1} parent=5 // pred_check_branch
        %215 = sbr.rel (%p212) target = $region36
      $region35: #{tpu_custom_call.1} parent=5 // pred_region
        %s216 = ssub.s32 %s17, 1
        %s217 = sand.u32 %s44, 1
        %s218 = scalar_lea.sflag [#allocation3], %s217
        %s219 = sand.u32 %s44, 1
        %s220 = smul.addr %s219, 4
        %s221 = scalar_lea.vmem [#allocation2], %s220
        // Predicated region
        $region37: #{tpu_custom_call.1} parent=35 // pred_check
          %p222 = pneg %p57
        $region38: #{tpu_custom_call.1} parent=35 // pred_check_branch
          %224 = sbr.rel (%p222) target = $region40
        $region39: #{tpu_custom_call.1} parent=35 // pred_region
          %225 = dma.done %s218, 64
        $region40: #{tpu_custom_call.1} parent=35 // pred_fallthru
          _
        // Predicated region
        $region41: #{tpu_custom_call.1} parent=35 // pred_check
          %p226 = pneg %p83
        $region42: #{tpu_custom_call.1} parent=35 // pred_check_branch
          %228 = sbr.rel (%p226) target = $region44
        $region43: #{tpu_custom_call.1} parent=35 // pred_region
          %229 = dma.done [#allocation6], 64
        $region44: #{tpu_custom_call.1} parent=35 // pred_fallthru
          _
        %s230 = sand.u32 %s44, 1
        %s231 = scalar_lea.sflag [#allocation3], %s230
        %s232 = sand.u32 %s44, 1
        %s233 = smul.addr %s232, 4
        %s234 = scalar_lea.vmem [#allocation2], %s233
        %p235 = pneg %p57
        %p236 = pneg %p54
        %p237 = pneg %p83
        %p238 = pneg %p80
        %p239 = pneg %p104
        %p240 = pneg %p101
        %p241 = pneg %p125
        %p242 = pneg %p122
        %p243 = pneg %p153
        %p244 = pneg %p150
        %s245 = sand.u32 %s140, 1
        %s246 = scalar_lea.sflag [#allocation4], %s245
        %s247 = sand.u32 %s140, 1
        %s248 = smul.addr %s247, 4
        %s249 = scalar_lea.vmem [#allocation7], %s248
        %v250 = vld [vmem:[%s221] sm:$0xf]
        %v251 = vunpack.c.l.bf16 %v250
        %v252 = vld [vmem:[#allocation5] sm:$0xf]
        %v253 = vunpack.c.l.bf16 %v252
        %v254 = vadd.f32 %v251, %v253
        %vm255 = vcmask 523264
        %v256 = vsel %vm255, %v254, 0.0
        %257 = vadd.xlane.f32.xlu0 %v256
        %v258 = vpop.xlane.xlu0 %257
        %v259 = vrcp.pop 64.0
        %v260 = vmul.f32 %v258, %v259
        %v261 = vmul.f32 %v254, %v254
        %v262 = vsel %vm255, %v261, 0.0
        %263 = vadd.xlane.f32.xlu0 %v262
        %v264 = vpop.xlane.xlu0 %263
        %v265 = vmul.f32 %v264, %v259
        %v266 = vmul.f32 %v260, %v260
        %v267 = vsub.f32 %v265, %v266
        %v268 = vmax.f32 %v267, 0.0
        %v269 = vsub.f32 %v254, %v260
        %v270 = vadd.f32 %v268, 1e-12
        %v271 = vrsqrt.pop %v270
        %v272 = vmul.f32 %v269, %v271
        %v273 = vld [vmem:[%s2] sm:$0x1]
        %v275 = vlaneseq
        %v276 = vshrl.u32 %v275, 7
        %v277 = vsub.s32 0, %v276
        %v278 = vrot.slane %v273, %v277
        %v280 = vmul.f32 %v272, %v278
        %v281 = vld [vmem:[%s3] sm:$0x1]
        %v283 = vlaneseq
        %v284 = vshrl.u32 %v283, 7
        %v285 = vsub.s32 0, %v284
        %v286 = vrot.slane %v281, %v285
        %v288 = vadd.f32 %v280, %v286
        %v289 = vpack.c.bf16 %v288, %v288
        %vm290 = vcmask 519168
        %291 = vst.msk [vmem:[%s249] sm:$0xf] %vm290, %v289
        %s292 = sand.u32 %s140, 1
        %s293 = scalar_lea.sflag [#allocation4], %s292
        %s294 = sand.u32 %s140, 1
        %s295 = smul.addr %s294, 4
        %s296 = scalar_lea.vmem [#allocation7], %s295
        // Predicated region
        $region45: #{tpu_custom_call.1} parent=35 // pred_check
          %p297 = pneg %p150
        $region46: #{tpu_custom_call.1} parent=35 // pred_check_branch
          %299 = sbr.rel (%p297) target = $region48
        $region47: #{tpu_custom_call.1} parent=35 // pred_region
          %s301 = ssub.s32 64, 64
          %302 = vsyncadd %s293, %s301
          %s303 = sadd.s32 %s27, %s26
          %s304 = smul.addr %s303, 64
          %s305 = scalar_lea.hbm %s4, %s304
          %s307 = sshll.u32 %s296, 4
          %s308 = int_to_ptr.vmem [resolvable:$true] %s307
          %310 = dma.vmem_to_hbm [thread:$0]  %s308, 64, %s305, %s293
        $region48: #{tpu_custom_call.1} parent=35 // pred_fallthru
          _
      $region36: #{tpu_custom_call.1} parent=5 // pred_fallthru
        _
      %p311 = scmp.le.s32.totalorder 2, %s17
      // Predicated region
      $region49: #{tpu_custom_call.1} parent=5 // pred_check
        %p312 = pneg %p311
      $region50: #{tpu_custom_call.1} parent=5 // pred_check_branch
        %314 = sbr.rel (%p312) target = $region52
      $region51: #{tpu_custom_call.1} parent=5 // pred_region
        %s315 = ssub.s32 %s17, 2
        // Predicated region
        $region53: #{tpu_custom_call.1} parent=51 // pred_check
          %p316 = pneg %p156
        $region54: #{tpu_custom_call.1} parent=51 // pred_check_branch
          %318 = sbr.rel (%p316) target = $region56
        $region55: #{tpu_custom_call.1} parent=51 // pred_region
          %s319 = sand.u32 %s141, 1
          %s320 = scalar_lea.sflag [#allocation4], %s319
          %s321 = sand.u32 %s141, 1
          %s322 = smul.addr %s321, 4
          %s323 = scalar_lea.vmem [#allocation7], %s322
          %324 = dma.done %s320, 64
        $region56: #{tpu_custom_call.1} parent=51 // pred_fallthru
          _
      $region52: #{tpu_custom_call.1} parent=5 // pred_fallthru
        _
    $region6: #{tpu_custom_call.1} parent=1 // loop_footer
      %s21 = sadd.s32 1, %s17
    $region7: #{tpu_custom_call.1} parent=1 // loop_footer_branch
      %16 = sbr.rel target = $region3
    $region8: #{tpu_custom_call.1} parent=1 // loop_exit
      _
    %325 = vsyncpa [#allocation3], 1
    %s326 = scalar_lea.sflag [#allocation3], 1
    %327 = vsyncpa %s326, 1
    %328 = vsyncpa [#allocation6], 1
    %329 = vsyncpa [#allocation4], 1
    %s330 = scalar_lea.sflag [#allocation4], 1
    %331 = vsyncpa %s330, 1

</llo_original>
